<compile_context>
chip_gen: v6e
topology: v6e:2x2x1
jax: 0.10.0
libtpu: 0.0.40
codegen_flags: <defaults>
</compile_context>

<pallas_src>
import functools

import jax
import jax.numpy as jnp
from jax import lax
from jax.experimental import pallas as pl
from jax.experimental.pallas import tpu as pltpu


def _mlp_kernel(x_ref, w1_ref, b1_ref, w2_ref, b2_ref, w3_ref, b3_ref, o_ref,
                *, sub_m):
    # Weights / biases are tiny and VMEM-resident; load once per grid step.
    w1 = w1_ref[...]
    w2 = w2_ref[...]
    w3 = w3_ref[...]
    b1 = b1_ref[...]
    b2 = b2_ref[...]
    b3 = b3_ref[...]

    n_sub = x_ref.shape[0] // sub_m          # static (block shapes are static)
    unroll = min(n_sub, 8)                   # bounded unroll: LLO visibility
                                             # without schedule bloat

    def body(s, carry):
        r0 = pl.multiple_of(s * sub_m, sub_m)
        xs = x_ref[pl.ds(r0, sub_m), :]
        # fc1 + relu   (f32 accumulate on the MXU, bias/relu on the VPU)
        h1 = jnp.dot(xs, w1, preferred_element_type=jnp.float32)
        h1 = jnp.maximum(h1 + b1, 0.0)
        # fc2 + relu
        h2 = jnp.dot(h1.astype(w2.dtype), w2,
                     preferred_element_type=jnp.float32)
        h2 = jnp.maximum(h2 + b2, 0.0)
        # fc3 (no activation)
        y = jnp.dot(h2.astype(w3.dtype), w3,
                    preferred_element_type=jnp.float32) + b3
        o_ref[pl.ds(r0, sub_m), :] = y.astype(o_ref.dtype)
        return carry

    lax.fori_loop(0, n_sub, body, 0, unroll=unroll)


def _choose_tiles(m, sub_m=128, max_block_m=4096):
    """Pick (block_m, sub_m): big row tiles; >=2 grid steps when M allows."""
    if m <= sub_m:
        bm = max(8, -(-m // 8) * 8)          # single tile, 8-row (f32 sublane) multiple
        return bm, bm
    target = -(-m // 2)                      # ceil(m/2): keep both TCs busy
    bm = min(max_block_m, -(-target // sub_m) * sub_m)
    return bm, sub_m


@functools.partial(jax.jit, static_argnames=("block_m", "sub_m"))
def fourier_net_final_block(x, params, block_m=None, sub_m=None):
    """Applies fc1 -> relu -> fc2 -> relu -> fc3 along the last axis of x."""
    w1, b1, w2, b2, w3, b3 = params
    in_f, hid = w1.shape
    hid2 = w2.shape[1]
    out_f = w3.shape[1]

    lead_shape = x.shape[:-1]
    m = 1
    for d in lead_shape:
        m *= d

    auto_bm, auto_sm = _choose_tiles(m)
    if block_m is None:
        block_m = auto_bm
    if sub_m is None:
        sub_m = min(auto_sm, block_m)

    # x streams in its native dtype (single HBM read, no extra cast pass).
    x2d = x.reshape(m, in_f)
    b1r = b1.astype(jnp.float32).reshape(1, hid)
    b2r = b2.astype(jnp.float32).reshape(1, hid2)
    b3r = b3.astype(jnp.float32).reshape(1, out_f)

    grid = (pl.cdiv(m, block_m),)
    full = lambda shape: pl.BlockSpec(shape, lambda i: (0, 0))  # VMEM-resident

    out2d = pl.pallas_call(
        functools.partial(_mlp_kernel, sub_m=sub_m),
        out_shape=jax.ShapeDtypeStruct((m, out_f), x.dtype),
        grid_spec=pltpu.PrefetchScalarGridSpec(
            num_scalar_prefetch=0,
            grid=grid,
            in_specs=[
                pl.BlockSpec((block_m, in_f), lambda i: (i, 0)),  # x rows (streamed)
                full((in_f, hid)),     # w1
                full((1, hid)),        # b1
                full((hid, hid2)),     # w2
                full((1, hid2)),       # b2
                full((hid2, out_f)),   # w3
                full((1, out_f)),      # b3
            ],
            out_specs=pl.BlockSpec((block_m, out_f), lambda i: (i, 0)),
        ),
        compiler_params=pltpu.CompilerParams(
            dimension_semantics=("parallel",),  # shard row tiles across TCs
        ),
    )(x2d, w1, b1r, w2, b2r, w3, b3r)

    return out2d.reshape(*lead_shape, out_f)


def init_params(key, in_features, hidden_features, out_features, dtype=jnp.float32):
    """Deterministic init mimicking nn.Linear; weights stored as (in, out)."""
    h2 = int(hidden_features / 2)
    keys = jax.random.split(key, 6)

    def linear(kw, kb, fan_in, fan_out):
        bound = 1.0 / (fan_in ** 0.5)
        w = jax.random.uniform(kw, (fan_in, fan_out), dtype, -bound, bound)
        b = jax.random.uniform(kb, (fan_out,), dtype, -bound, bound)
        return w, b

    w1, b1 = linear(keys[0], keys[1], in_features, hidden_features)
    w2, b2 = linear(keys[2], keys[3], hidden_features, h2)
    w3, b3 = linear(keys[4], keys[5], h2, out_features)
    return (w1, b1, w2, b2, w3, b3)


def _reference(x, params):
    w1, b1, w2, b2, w3, b3 = params
    h = jax.nn.relu(x @ w1 + b1)
    h = jax.nn.relu(h @ w2 + b2)
    return h @ w3 + b3


if __name__ == "__main__":
    # Small shapes consistent with the module: batch=2, seq=64 points,
    # in_features=32, hidden_features=32 (-> hidden/2 = 16), out_features=16.
    in_features, hidden_features, out_features = 32, 32, 16
    batch, seq = 2, 64

    key = jax.random.PRNGKey(0)
    k_x, k_p = jax.random.split(key)

    params = init_params(k_p, in_features, hidden_features, out_features)
    x = jax.random.normal(k_x, (batch, seq, in_features), dtype=jnp.float32)

    out = fourier_net_final_block(x, params)
    out = jax.block_until_ready(out)

    ref = _reference(x, params)
    assert out.shape == (batch, seq, out_features), out.shape
    # TPU matmul default precision (bf16 passes) differs slightly between the
    # Pallas kernel and the XLA reference; use a correspondingly safe tolerance.
    assert jnp.allclose(out, ref, atol=2e-2, rtol=2e-2), "mismatch vs reference"

    print("KERNEL_OK")
</pallas_src>

<mosaic_0001>
module attributes {stable_mosaic.version = 11 : i64} {
  func.func @_mlp_kernel(%arg0: i32, %arg1: memref<128x32xf32, #tpu.memory_space<vmem>>, %arg2: memref<32x32xf32, #tpu.memory_space<vmem>>, %arg3: memref<1x32xf32, #tpu.memory_space<vmem>>, %arg4: memref<32x16xf32, #tpu.memory_space<vmem>>, %arg5: memref<1x16xf32, #tpu.memory_space<vmem>>, %arg6: memref<16x16xf32, #tpu.memory_space<vmem>>, %arg7: memref<1x16xf32, #tpu.memory_space<vmem>>, %arg8: memref<128x16xf32, #tpu.memory_space<vmem>>) attributes {dimension_semantics = [#tpu.dimension_semantics<parallel>], iteration_bounds = array<i64: 1>, scalar_prefetch = 0 : i64, scratch_operands = 0 : i64, tpu.core_type = #tpu.core_type<tc>, window_params = [{transform_indices = @transform_0, window_bounds = array<i64: 128, 32>}, {pipeline_mode = #tpu.pipeline_mode<synchronous>, transform_indices = @transform_1, window_bounds = array<i64: 32, 32>}, {pipeline_mode = #tpu.pipeline_mode<synchronous>, transform_indices = @transform_2, window_bounds = array<i64: 1, 32>}, {pipeline_mode = #tpu.pipeline_mode<synchronous>, transform_indices = @transform_3, window_bounds = array<i64: 32, 16>}, {pipeline_mode = #tpu.pipeline_mode<synchronous>, transform_indices = @transform_4, window_bounds = array<i64: 1, 16>}, {pipeline_mode = #tpu.pipeline_mode<synchronous>, transform_indices = @transform_5, window_bounds = array<i64: 16, 16>}, {pipeline_mode = #tpu.pipeline_mode<synchronous>, transform_indices = @transform_6, window_bounds = array<i64: 1, 16>}, {transform_indices = @transform_7, window_bounds = array<i64: 128, 16>}]} {
    %c0 = arith.constant 0 : index
    %c0_0 = arith.constant 0 : index
    %0 = vector.load %arg2[%c0, %c0_0] : memref<32x32xf32, #tpu.memory_space<vmem>>, vector<32x32xf32>
    %c0_1 = arith.constant 0 : index
    %c0_2 = arith.constant 0 : index
    %1 = vector.load %arg4[%c0_1, %c0_2] : memref<32x16xf32, #tpu.memory_space<vmem>>, vector<32x16xf32>
    %c0_3 = arith.constant 0 : index
    %c0_4 = arith.constant 0 : index
    %2 = vector.load %arg6[%c0_3, %c0_4] : memref<16x16xf32, #tpu.memory_space<vmem>>, vector<16x16xf32>
    %c0_5 = arith.constant 0 : index
    %c0_6 = arith.constant 0 : index
    %3 = vector.load %arg3[%c0_5, %c0_6] : memref<1x32xf32, #tpu.memory_space<vmem>>, vector<1x32xf32>
    %c0_7 = arith.constant 0 : index
    %c0_8 = arith.constant 0 : index
    %4 = vector.load %arg5[%c0_7, %c0_8] : memref<1x16xf32, #tpu.memory_space<vmem>>, vector<1x16xf32>
    %c0_9 = arith.constant 0 : index
    %c0_10 = arith.constant 0 : index
    %5 = vector.load %arg7[%c0_9, %c0_10] : memref<1x16xf32, #tpu.memory_space<vmem>>, vector<1x16xf32>
    %c0_i32 = arith.constant 0 : i32
    %c128_i32 = arith.constant 128 : i32
    %6 = arith.muli %c0_i32, %c128_i32 : i32
    %7 = tpu.assume_multiple %6, 128 : i32
    %8 = arith.index_cast %7 : i32 to index
    %c0_11 = arith.constant 0 : index
    %9 = vector.load %arg1[%8, %c0_11] : memref<128x32xf32, #tpu.memory_space<vmem>>, vector<128x32xf32>
    %cst = arith.constant dense<0.000000e+00> : vector<128x32xf32>
    %10 = tpu.matmul %9, %0, %cst {dimension_numbers = #tpu.dot_dimension_numbers<[1], [0], [0], [1], [0, 0, 1, 1], [], []>} : vector<128x32xf32>, vector<32x32xf32>, vector<128x32xf32> -> vector<128x32xf32>
    %11 = vector.broadcast %3 : vector<1x32xf32> to vector<128x32xf32>
    %12 = arith.addf %10, %11 : vector<128x32xf32>
    %cst_12 = arith.constant 0.000000e+00 : f32
    %13 = vector.broadcast %cst_12 : f32 to vector<128x32xf32>
    %14 = arith.maximumf %12, %13 : vector<128x32xf32>
    %cst_13 = arith.constant dense<0.000000e+00> : vector<128x16xf32>
    %15 = tpu.matmul %14, %1, %cst_13 {dimension_numbers = #tpu.dot_dimension_numbers<[1], [0], [0], [1], [0, 0, 1, 1], [], []>} : vector<128x32xf32>, vector<32x16xf32>, vector<128x16xf32> -> vector<128x16xf32>
    %16 = vector.broadcast %4 : vector<1x16xf32> to vector<128x16xf32>
    %17 = arith.addf %15, %16 : vector<128x16xf32>
    %cst_14 = arith.constant 0.000000e+00 : f32
    %18 = vector.broadcast %cst_14 : f32 to vector<128x16xf32>
    %19 = arith.maximumf %17, %18 : vector<128x16xf32>
    %cst_15 = arith.constant dense<0.000000e+00> : vector<128x16xf32>
    %20 = tpu.matmul %19, %2, %cst_15 {dimension_numbers = #tpu.dot_dimension_numbers<[1], [0], [0], [1], [0, 0, 1, 1], [], []>} : vector<128x16xf32>, vector<16x16xf32>, vector<128x16xf32> -> vector<128x16xf32>
    %21 = vector.broadcast %5 : vector<1x16xf32> to vector<128x16xf32>
    %22 = arith.addf %20, %21 : vector<128x16xf32>
    %23 = arith.index_cast %7 : i32 to index
    %c0_16 = arith.constant 0 : index
    %24 = vector.load %arg8[%23, %c0_16] : memref<128x16xf32, #tpu.memory_space<vmem>>, vector<128x16xf32>
    tpu.vector_store %arg8[%23, %c0_16], %22 {strides = array<i32>} : memref<128x16xf32, #tpu.memory_space<vmem>>, vector<128x16xf32>,
    %c1_i32 = arith.constant 1 : i32
    return
  }
  func.func @transform_0(%arg0: i32) -> (i32, i32) {
    %c0_i32 = arith.constant 0 : i32
    %c0_i32_0 = arith.constant 0 : i32
    return %arg0, %c0_i32 : i32, i32
  }
  func.func @transform_1(%arg0: i32) -> (i32, i32) {
    %c0_i32 = arith.constant 0 : i32
    %c0_i32_0 = arith.constant 0 : i32
    %c0_i32_1 = arith.constant 0 : i32
    return %c0_i32, %c0_i32_0 : i32, i32
  }
  func.func @transform_2(%arg0: i32) -> (i32, i32) {
    %c0_i32 = arith.constant 0 : i32
    %c0_i32_0 = arith.constant 0 : i32
    %c0_i32_1 = arith.constant 0 : i32
    return %c0_i32, %c0_i32_0 : i32, i32
  }
  func.func @transform_3(%arg0: i32) -> (i32, i32) {
    %c0_i32 = arith.constant 0 : i32
    %c0_i32_0 = arith.constant 0 : i32
    %c0_i32_1 = arith.constant 0 : i32
    return %c0_i32, %c0_i32_0 : i32, i32
  }
  func.func @transform_4(%arg0: i32) -> (i32, i32) {
    %c0_i32 = arith.constant 0 : i32
    %c0_i32_0 = arith.constant 0 : i32
    %c0_i32_1 = arith.constant 0 : i32
    return %c0_i32, %c0_i32_0 : i32, i32
  }
  func.func @transform_5(%arg0: i32) -> (i32, i32) {
    %c0_i32 = arith.constant 0 : i32
    %c0_i32_0 = arith.constant 0 : i32
    %c0_i32_1 = arith.constant 0 : i32
    return %c0_i32, %c0_i32_0 : i32, i32
  }
  func.func @transform_6(%arg0: i32) -> (i32, i32) {
    %c0_i32 = arith.constant 0 : i32
    %c0_i32_0 = arith.constant 0 : i32
    %c0_i32_1 = arith.constant 0 : i32
    return %c0_i32, %c0_i32_0 : i32, i32
  }
  func.func @transform_7(%arg0: i32) -> (i32, i32) {
    %c0_i32 = arith.constant 0 : i32
    %c0_i32_0 = arith.constant 0 : i32
    return %arg0, %c0_i32 : i32, i32
  }
}

</mosaic_0001>

<llo_original>
// kernel: fourier_net_final_block.1
$region0: #{fourier_net_final_block.1}
  #allocation0 [shape = 'u32[]', space=smem, size = 0x4, offset = 0x4, fixed_abs, tag = 'smem constant byte address 0x4 - core index']
  #allocation1 [shape = 'u32[144,128]{1,0:T(1,128)}', space=vmem, size = 0x12000, scoped, tag = 'internal scratch']
  %s0 = inlined_call_operand.vmem [shape: f32[128,32], index: 0, kind: input, shape index: {}]
  %s1 = inlined_call_operand.vmem [shape: f32[32,32], index: 1, kind: input, shape index: {}]
  %s2 = inlined_call_operand.vmem [shape: f32[1,32], index: 2, kind: input, shape index: {}]
  %s3 = inlined_call_operand.vmem [shape: f32[32,16], index: 3, kind: input, shape index: {}]
  %s4 = inlined_call_operand.vmem [shape: f32[1,16], index: 4, kind: input, shape index: {}]
  %s5 = inlined_call_operand.vmem [shape: f32[16,16], index: 5, kind: input, shape index: {}]
  %s6 = inlined_call_operand.vmem [shape: f32[1,16], index: 6, kind: input, shape index: {}]
  %s7 = inlined_call_operand.vmem [shape: f32[128,16], index: 7, kind: output, shape index: {}]
  %s8 = sld [smem:[#allocation0]]
  $region38: #{fourier_net_final_block.1} parent=0
    _
  %s10 = ssub.s32 1, %s8
  %s11 = scalar_select 0, %s10, %s8
  // Predicated region
  $region2: #{fourier_net_final_block.1} parent=0 // pred_check
    _
  $region3: #{fourier_net_final_block.1} parent=0 // pred_check_branch
    %13 = sbr.rel (0) target = $region5
  $region4: #{fourier_net_final_block.1} parent=0 // pred_region
    _
  $region5: #{fourier_net_final_block.1} parent=0 // pred_fallthru
    _
  // Predicated region
  $region6: #{fourier_net_final_block.1} parent=0 // pred_check
    _
  $region7: #{fourier_net_final_block.1} parent=0 // pred_check_branch
    %15 = sbr.rel (0) target = $region9
  $region8: #{fourier_net_final_block.1} parent=0 // pred_region
    _
  $region9: #{fourier_net_final_block.1} parent=0 // pred_fallthru
    _
  // Predicated region
  $region10: #{fourier_net_final_block.1} parent=0 // pred_check
    _
  $region11: #{fourier_net_final_block.1} parent=0 // pred_check_branch
    %17 = sbr.rel (0) target = $region13
  $region12: #{fourier_net_final_block.1} parent=0 // pred_region
    _
  $region13: #{fourier_net_final_block.1} parent=0 // pred_fallthru
    _
  // Predicated region
  $region14: #{fourier_net_final_block.1} parent=0 // pred_check
    _
  $region15: #{fourier_net_final_block.1} parent=0 // pred_check_branch
    %19 = sbr.rel (0) target = $region17
  $region16: #{fourier_net_final_block.1} parent=0 // pred_region
    _
  $region17: #{fourier_net_final_block.1} parent=0 // pred_fallthru
    _
  // Predicated region
  $region18: #{fourier_net_final_block.1} parent=0 // pred_check
    _
  $region19: #{fourier_net_final_block.1} parent=0 // pred_check_branch
    %21 = sbr.rel (0) target = $region21
  $region20: #{fourier_net_final_block.1} parent=0 // pred_region
    _
  $region21: #{fourier_net_final_block.1} parent=0 // pred_fallthru
    _
  // Predicated region
  $region22: #{fourier_net_final_block.1} parent=0 // pred_check
    _
  $region23: #{fourier_net_final_block.1} parent=0 // pred_check_branch
    %23 = sbr.rel (0) target = $region25
  $region24: #{fourier_net_final_block.1} parent=0 // pred_region
    _
  $region25: #{fourier_net_final_block.1} parent=0 // pred_fallthru
    _
  // Predicated region
  $region26: #{fourier_net_final_block.1} parent=0 // pred_check
    _
  $region27: #{fourier_net_final_block.1} parent=0 // pred_check_branch
    %25 = sbr.rel (0) target = $region29
  $region28: #{fourier_net_final_block.1} parent=0 // pred_region
    _
  $region29: #{fourier_net_final_block.1} parent=0 // pred_fallthru
    _
  %v26 = vld [vmem:[%s1] sm:$0xff]
  %v27 = vld [vmem:[%s1 + $0x8] sm:$0xff]
  %v28 = vld [vmem:[%s1 + $0x10] sm:$0xff]
  %v29 = vld [vmem:[%s1 + $0x18] sm:$0xff]
  %v30 = vld [vmem:[%s3] sm:$0xff]
  %v31 = vld [vmem:[%s3 + $0x8] sm:$0xff]
  %v32 = vld [vmem:[%s3 + $0x10] sm:$0xff]
  %v33 = vld [vmem:[%s3 + $0x18] sm:$0xff]
  %v34 = vld [vmem:[%s5] sm:$0xff]
  %v35 = vld [vmem:[%s5 + $0x8] sm:$0xff]
  %v36 = vld [vmem:[%s2] sm:$0x1]
  %v37 = vld [vmem:[%s4] sm:$0x1]
  %v38 = vld [vmem:[%s6] sm:$0x1]
  %v39 = vld [vmem:[%s0] sm:$0xff]
  %v40 = vld [vmem:[%s0 + $0x8] sm:$0xff]
  %v41 = vld [vmem:[%s0 + $0x10] sm:$0xff]
  %v42 = vld [vmem:[%s0 + $0x18] sm:$0xff]
  %v43 = vld [vmem:[%s0 + $0x20] sm:$0xff]
  %v44 = vld [vmem:[%s0 + $0x28] sm:$0xff]
  %v45 = vld [vmem:[%s0 + $0x30] sm:$0xff]
  %v46 = vld [vmem:[%s0 + $0x38] sm:$0xff]
  %v47 = vld [vmem:[%s0 + $0x40] sm:$0xff]
  %v48 = vld [vmem:[%s0 + $0x48] sm:$0xff]
  %v49 = vld [vmem:[%s0 + $0x50] sm:$0xff]
  %v50 = vld [vmem:[%s0 + $0x58] sm:$0xff]
  %v51 = vld [vmem:[%s0 + $0x60] sm:$0xff]
  %v52 = vld [vmem:[%s0 + $0x68] sm:$0xff]
  %v53 = vld [vmem:[%s0 + $0x70] sm:$0xff]
  %v54 = vld [vmem:[%s0 + $0x78] sm:$0xff]
  %v56 = vlaneseq
  %v57 = vshrl.u32 %v56, 7
  %v58 = vsub.s32 0, %v57
  %v59 = vrot.slane %v36, %v58
  %vm61 = vcmask 261120
  %v63 = vsel %vm61, %v39, 0
  %v66 = vsel %vm61, %v40, 0
  %v69 = vsel %vm61, %v41, 0
  %v72 = vsel %vm61, %v42, 0
  %v75 = vsel %vm61, %v43, 0
  %v78 = vsel %vm61, %v44, 0
  %v81 = vsel %vm61, %v45, 0
  %v84 = vsel %vm61, %v46, 0
  %v87 = vsel %vm61, %v47, 0
  %v90 = vsel %vm61, %v48, 0
  %v93 = vsel %vm61, %v49, 0
  %v96 = vsel %vm61, %v50, 0
  %v99 = vsel %vm61, %v51, 0
  %v102 = vsel %vm61, %v52, 0
  %v105 = vsel %vm61, %v53, 0
  %v108 = vsel %vm61, %v54, 0
  %110 = vmatprep.subr.mxu0 0.0
  %111 = vmatpush1.msra.mxu0 0.0
  %112 = vmatprep.subr.mxu0 0.0
  %113 = vmatpush1.msra.mxu0 0.0
  %114 = vmatprep.subr.mxu0 0.0
  %115 = vmatpush1.msra.mxu0 0.0
  %116 = vmatprep.subr.mxu0 0.0
  %117 = vmatpush1.msra.mxu0 0.0
  %118 = vmatprep.subr.mxu0 0.0
  %119 = vmatpush1.msra.mxu0 0.0
  %120 = vmatprep.subr.mxu0 0.0
  %121 = vmatpush1.msra.mxu0 0.0
  %122 = vmatprep.subr.mxu0 0.0
  %123 = vmatpush1.msra.mxu0 0.0
  %124 = vmatprep.subr.mxu0 0.0
  %125 = vmatpush1.msra.mxu0 0.0
  %126 = vmatprep.subr.mxu0 0.0
  %127 = vmatpush1.msra.mxu0 0.0
  %128 = vmatprep.subr.mxu0 0.0
  %129 = vmatpush1.msra.mxu0 0.0
  %130 = vmatprep.subr.mxu0 0.0
  %131 = vmatpush1.msra.mxu0 0.0
  %132 = vmatprep.subr.mxu0 0.0
  %133 = vmatpush1.msra.mxu0 0.0
  %134 = vmatprep.subr.mxu0 0.0
  %135 = vmatpush1.msra.mxu0 %v29
  %136 = vmatprep.subr.mxu0 0.0
  %137 = vmatpush1.msra.mxu0 %v28
  %138 = vmatprep.subr.mxu0 0.0
  %139 = vmatpush1.msra.mxu0 %v27
  %140 = vmatprep.subr.mxu0 0.0
  %141 = vmatpush1.msra.mxu0 %v26
  %142 = vmatprep.subr.mxu0 0.0
  %143 = vmatpush2.msra.mxu0 0.0
  %144 = vmatprep.subr.mxu0 0.0
  %145 = vmatpush2.msra.mxu0 0.0
  %146 = vmatprep.subr.mxu0 0.0
  %147 = vmatpush2.msra.mxu0 0.0
  %148 = vmatprep.subr.mxu0 0.0
  %149 = vmatpush2.msra.mxu0 0.0
  %150 = vmatprep.subr.mxu0 0.0
  %151 = vmatpush2.msra.mxu0 0.0
  %152 = vmatprep.subr.mxu0 0.0
  %153 = vmatpush2.msra.mxu0 0.0
  %154 = vmatprep.subr.mxu0 0.0
  %155 = vmatpush2.msra.mxu0 0.0
  %156 = vmatprep.subr.mxu0 0.0
  %157 = vmatpush2.msra.mxu0 0.0
  %158 = vmatprep.subr.mxu0 0.0
  %159 = vmatpush2.msra.mxu0 0.0
  %160 = vmatprep.subr.mxu0 0.0
  %161 = vmatpush2.msra.mxu0 0.0
  %162 = vmatprep.subr.mxu0 0.0
  %163 = vmatpush2.msra.mxu0 0.0
  %164 = vmatprep.subr.mxu0 0.0
  %165 = vmatpush2.msra.mxu0 0.0
  %166 = vmatprep.subr.mxu0 0.0
  %167 = vmatpush2.msra.mxu0 0.0
  %168 = vmatprep.subr.mxu0 0.0
  %169 = vmatpush2.msra.mxu0 0.0
  %170 = vmatprep.subr.mxu0 0.0
  %171 = vmatpush2.msra.mxu0 0.0
  %172 = vmatprep.subr.mxu0 0.0
  %173 = vmatpush2.msra.mxu0 0.0
  %174 = vmatprep.mubr.f32.mxu0 0.0
  %175 = vmatmul.mubr.f32.gmra.mxu0 %v63
  %v176 = vpop.f32.mrf.mxu0
  %v177 = vadd.f32 %v59, %v176
  %v178 = vpop.f32.mrf.mxu0
  %179 = vmatprep.mubr.f32.mxu0 0.0
  %180 = vmatmul.mubr.f32.gmra.mxu0 %v66
  %v181 = vpop.f32.mrf.mxu0
  %v182 = vadd.f32 %v59, %v181
  %v183 = vpop.f32.mrf.mxu0
  %184 = vmatprep.mubr.f32.mxu0 0.0
  %185 = vmatmul.mubr.f32.gmra.mxu0 %v69
  %v186 = vpop.f32.mrf.mxu0
  %v187 = vadd.f32 %v59, %v186
  %v188 = vpop.f32.mrf.mxu0
  %189 = vmatprep.mubr.f32.mxu0 0.0
  %190 = vmatmul.mubr.f32.gmra.mxu0 %v72
  %v191 = vpop.f32.mrf.mxu0
  %v192 = vadd.f32 %v59, %v191
  %v193 = vpop.f32.mrf.mxu0
  %194 = vmatprep.mubr.f32.mxu0 0.0
  %195 = vmatmul.mubr.f32.gmra.mxu0 %v75
  %v196 = vpop.f32.mrf.mxu0
  %v197 = vadd.f32 %v59, %v196
  %v198 = vpop.f32.mrf.mxu0
  %199 = vmatprep.mubr.f32.mxu0 0.0
  %200 = vmatmul.mubr.f32.gmra.mxu0 %v78
  %v201 = vpop.f32.mrf.mxu0
  %v202 = vadd.f32 %v59, %v201
  %v203 = vpop.f32.mrf.mxu0
  %204 = vmatprep.mubr.f32.mxu0 0.0
  %205 = vmatmul.mubr.f32.gmra.mxu0 %v81
  %v206 = vpop.f32.mrf.mxu0
  %v207 = vadd.f32 %v59, %v206
  %v208 = vpop.f32.mrf.mxu0
  %209 = vmatprep.mubr.f32.mxu0 0.0
  %210 = vmatmul.mubr.f32.gmra.mxu0 %v84
  %v211 = vpop.f32.mrf.mxu0
  %v212 = vadd.f32 %v59, %v211
  %v213 = vpop.f32.mrf.mxu0
  %214 = vmatprep.mubr.f32.mxu0 0.0
  %215 = vmatmul.mubr.f32.gmra.mxu0 %v87
  %v216 = vpop.f32.mrf.mxu0
  %v217 = vadd.f32 %v59, %v216
  %v218 = vpop.f32.mrf.mxu0
  %219 = vmatprep.mubr.f32.mxu0 0.0
  %220 = vmatmul.mubr.f32.gmra.mxu0 %v90
  %v221 = vpop.f32.mrf.mxu0
  %v222 = vadd.f32 %v59, %v221
  %v223 = vpop.f32.mrf.mxu0
  %224 = vmatprep.mubr.f32.mxu0 0.0
  %225 = vmatmul.mubr.f32.gmra.mxu0 %v93
  %v226 = vpop.f32.mrf.mxu0
  %v227 = vadd.f32 %v59, %v226
  %v228 = vpop.f32.mrf.mxu0
  %229 = vmatprep.mubr.f32.mxu0 0.0
  %230 = vmatmul.mubr.f32.gmra.mxu0 %v96
  %v231 = vpop.f32.mrf.mxu0
  %v232 = vadd.f32 %v59, %v231
  %v233 = vpop.f32.mrf.mxu0
  %234 = vmatprep.mubr.f32.mxu0 0.0
  %235 = vmatmul.mubr.f32.gmra.mxu0 %v99
  %v236 = vpop.f32.mrf.mxu0
  %v237 = vadd.f32 %v59, %v236
  %v238 = vpop.f32.mrf.mxu0
  %239 = vmatprep.mubr.f32.mxu0 0.0
  %240 = vmatmul.mubr.f32.gmra.mxu0 %v102
  %v241 = vpop.f32.mrf.mxu0
  %v242 = vadd.f32 %v59, %v241
  %v243 = vpop.f32.mrf.mxu0
  %244 = vmatprep.mubr.f32.mxu0 0.0
  %245 = vmatmul.mubr.f32.gmra.mxu0 %v105
  %v246 = vpop.f32.mrf.mxu0
  %v247 = vadd.f32 %v59, %v246
  %v248 = vpop.f32.mrf.mxu0
  %249 = vmatprep.mubr.f32.mxu0 0.0
  %250 = vmatmul.mubr.f32.gmra.mxu0 %v108
  %v251 = vpop.f32.mrf.mxu0
  %v252 = vadd.f32 %v59, %v251
  %v253 = vpop.f32.mrf.mxu0
  %254 = vdwg.mxu0
  %v255 = vmax.f32 %v177, 0.0
  %v256 = vmax.f32 %v182, 0.0
  %v257 = vmax.f32 %v187, 0.0
  %v258 = vmax.f32 %v192, 0.0
  %v259 = vmax.f32 %v197, 0.0
  %v260 = vmax.f32 %v202, 0.0
  %v261 = vmax.f32 %v207, 0.0
  %v262 = vmax.f32 %v212, 0.0
  %v263 = vmax.f32 %v217, 0.0
  %v264 = vmax.f32 %v222, 0.0
  %v265 = vmax.f32 %v227, 0.0
  %v266 = vmax.f32 %v232, 0.0
  %v267 = vmax.f32 %v237, 0.0
  %v268 = vmax.f32 %v242, 0.0
  %v269 = vmax.f32 %v247, 0.0
  %v270 = vmax.f32 %v252, 0.0
  %v272 = vlaneseq
  %v273 = vshrl.u32 %v272, 7
  %v274 = vsub.s32 0, %v273
  %v275 = vrot.slane %v37, %v274
  %v278 = vsel %vm61, %v255, 0
  %v281 = vsel %vm61, %v256, 0
  %v284 = vsel %vm61, %v257, 0
  %v287 = vsel %vm61, %v258, 0
  %v290 = vsel %vm61, %v259, 0
  %v293 = vsel %vm61, %v260, 0
  %v296 = vsel %vm61, %v261, 0
  %v299 = vsel %vm61, %v262, 0
  %v302 = vsel %vm61, %v263, 0
  %v305 = vsel %vm61, %v264, 0
  %v308 = vsel %vm61, %v265, 0
  %v311 = vsel %vm61, %v266, 0
  %v314 = vsel %vm61, %v267, 0
  %v317 = vsel %vm61, %v268, 0
  %v320 = vsel %vm61, %v269, 0
  %v323 = vsel %vm61, %v270, 0
  %325 = vmatprep.subr.mxu0 0.0
  %326 = vmatpush1.msra.mxu0 0.0
  %327 = vmatprep.subr.mxu0 0.0
  %328 = vmatpush1.msra.mxu0 0.0
  %329 = vmatprep.subr.mxu0 0.0
  %330 = vmatpush1.msra.mxu0 0.0
  %331 = vmatprep.subr.mxu0 0.0
  %332 = vmatpush1.msra.mxu0 0.0
  %333 = vmatprep.subr.mxu0 0.0
  %334 = vmatpush1.msra.mxu0 0.0
  %335 = vmatprep.subr.mxu0 0.0
  %336 = vmatpush1.msra.mxu0 0.0
  %337 = vmatprep.subr.mxu0 0.0
  %338 = vmatpush1.msra.mxu0 0.0
  %339 = vmatprep.subr.mxu0 0.0
  %340 = vmatpush1.msra.mxu0 0.0
  %341 = vmatprep.subr.mxu0 0.0
  %342 = vmatpush1.msra.mxu0 0.0
  %343 = vmatprep.subr.mxu0 0.0
  %344 = vmatpush1.msra.mxu0 0.0
  %345 = vmatprep.subr.mxu0 0.0
  %346 = vmatpush1.msra.mxu0 0.0
  %347 = vmatprep.subr.mxu0 0.0
  %348 = vmatpush1.msra.mxu0 0.0
  %349 = vmatprep.subr.mxu0 0.0
  %350 = vmatpush1.msra.mxu0 %v33
  %351 = vmatprep.subr.mxu0 0.0
  %352 = vmatpush1.msra.mxu0 %v32
  %353 = vmatprep.subr.mxu0 0.0
  %354 = vmatpush1.msra.mxu0 %v31
  %355 = vmatprep.subr.mxu0 0.0
  %356 = vmatpush1.msra.mxu0 %v30
  %357 = vmatprep.subr.mxu0 0.0
  %358 = vmatpush2.msra.mxu0 0.0
  %359 = vmatprep.subr.mxu0 0.0
  %360 = vmatpush2.msra.mxu0 0.0
  %361 = vmatprep.subr.mxu0 0.0
  %362 = vmatpush2.msra.mxu0 0.0
  %363 = vmatprep.subr.mxu0 0.0
  %364 = vmatpush2.msra.mxu0 0.0
  %365 = vmatprep.subr.mxu0 0.0
  %366 = vmatpush2.msra.mxu0 0.0
  %367 = vmatprep.subr.mxu0 0.0
  %368 = vmatpush2.msra.mxu0 0.0
  %369 = vmatprep.subr.mxu0 0.0
  %370 = vmatpush2.msra.mxu0 0.0
  %371 = vmatprep.subr.mxu0 0.0
  %372 = vmatpush2.msra.mxu0 0.0
  %373 = vmatprep.subr.mxu0 0.0
  %374 = vmatpush2.msra.mxu0 0.0
  %375 = vmatprep.subr.mxu0 0.0
  %376 = vmatpush2.msra.mxu0 0.0
  %377 = vmatprep.subr.mxu0 0.0
  %378 = vmatpush2.msra.mxu0 0.0
  %379 = vmatprep.subr.mxu0 0.0
  %380 = vmatpush2.msra.mxu0 0.0
  %381 = vmatprep.subr.mxu0 0.0
  %382 = vmatpush2.msra.mxu0 0.0
  %383 = vmatprep.subr.mxu0 0.0
  %384 = vmatpush2.msra.mxu0 0.0
  %385 = vmatprep.subr.mxu0 0.0
  %386 = vmatpush2.msra.mxu0 0.0
  %387 = vmatprep.subr.mxu0 0.0
  %388 = vmatpush2.msra.mxu0 0.0
  %389 = vmatprep.mubr.f32.mxu0 0.0
  %390 = vmatmul.mubr.f32.gmra.mxu0 %v278
  %v391 = vpop.f32.mrf.mxu0
  %v392 = vadd.f32 %v275, %v391
  %v393 = vpop.f32.mrf.mxu0
  %394 = vmatprep.mubr.f32.mxu0 0.0
  %395 = vmatmul.mubr.f32.gmra.mxu0 %v281
  %v396 = vpop.f32.mrf.mxu0
  %v397 = vadd.f32 %v275, %v396
  %v398 = vpop.f32.mrf.mxu0
  %399 = vmatprep.mubr.f32.mxu0 0.0
  %400 = vmatmul.mubr.f32.gmra.mxu0 %v284
  %v401 = vpop.f32.mrf.mxu0
  %v402 = vadd.f32 %v275, %v401
  %v403 = vpop.f32.mrf.mxu0
  %404 = vmatprep.mubr.f32.mxu0 0.0
  %405 = vmatmul.mubr.f32.gmra.mxu0 %v287
  %v406 = vpop.f32.mrf.mxu0
  %v407 = vadd.f32 %v275, %v406
  %v408 = vpop.f32.mrf.mxu0
  %409 = vmatprep.mubr.f32.mxu0 0.0
  %410 = vmatmul.mubr.f32.gmra.mxu0 %v290
  %v411 = vpop.f32.mrf.mxu0
  %v412 = vadd.f32 %v275, %v411
  %v413 = vpop.f32.mrf.mxu0
  %414 = vmatprep.mubr.f32.mxu0 0.0
  %415 = vmatmul.mubr.f32.gmra.mxu0 %v293
  %v416 = vpop.f32.mrf.mxu0
  %v417 = vadd.f32 %v275, %v416
  %v418 = vpop.f32.mrf.mxu0
  %419 = vmatprep.mubr.f32.mxu0 0.0
  %420 = vmatmul.mubr.f32.gmra.mxu0 %v296
  %v421 = vpop.f32.mrf.mxu0
  %v422 = vadd.f32 %v275, %v421
  %v423 = vpop.f32.mrf.mxu0
  %424 = vmatprep.mubr.f32.mxu0 0.0
  %425 = vmatmul.mubr.f32.gmra.mxu0 %v299
  %v426 = vpop.f32.mrf.mxu0
  %v427 = vadd.f32 %v275, %v426
  %v428 = vpop.f32.mrf.mxu0
  %429 = vmatprep.mubr.f32.mxu0 0.0
  %430 = vmatmul.mubr.f32.gmra.mxu0 %v302
  %v431 = vpop.f32.mrf.mxu0
  %v432 = vadd.f32 %v275, %v431
  %v433 = vpop.f32.mrf.mxu0
  %434 = vmatprep.mubr.f32.mxu0 0.0
  %435 = vmatmul.mubr.f32.gmra.mxu0 %v305
  %v436 = vpop.f32.mrf.mxu0
  %v437 = vadd.f32 %v275, %v436
  %v438 = vpop.f32.mrf.mxu0
  %439 = vmatprep.mubr.f32.mxu0 0.0
  %440 = vmatmul.mubr.f32.gmra.mxu0 %v308
  %v441 = vpop.f32.mrf.mxu0
  %v442 = vadd.f32 %v275, %v441
  %v443 = vpop.f32.mrf.mxu0
  %444 = vmatprep.mubr.f32.mxu0 0.0
  %445 = vmatmul.mubr.f32.gmra.mxu0 %v311
  %v446 = vpop.f32.mrf.mxu0
  %v447 = vadd.f32 %v275, %v446
  %v448 = vpop.f32.mrf.mxu0
  %449 = vmatprep.mubr.f32.mxu0 0.0
  %450 = vmatmul.mubr.f32.gmra.mxu0 %v314
  %v451 = vpop.f32.mrf.mxu0
  %v452 = vadd.f32 %v275, %v451
  %v453 = vpop.f32.mrf.mxu0
  %454 = vmatprep.mubr.f32.mxu0 0.0
  %455 = vmatmul.mubr.f32.gmra.mxu0 %v317
  %v456 = vpop.f32.mrf.mxu0
  %v457 = vadd.f32 %v275, %v456
  %v458 = vpop.f32.mrf.mxu0
  %459 = vmatprep.mubr.f32.mxu0 0.0
  %460 = vmatmul.mubr.f32.gmra.mxu0 %v320
  %v461 = vpop.f32.mrf.mxu0
  %v462 = vadd.f32 %v275, %v461
  %v463 = vpop.f32.mrf.mxu0
  %464 = vmatprep.mubr.f32.mxu0 0.0
  %465 = vmatmul.mubr.f32.gmra.mxu0 %v323
  %v466 = vpop.f32.mrf.mxu0
  %v467 = vadd.f32 %v275, %v466
  %v468 = vpop.f32.mrf.mxu0
  %469 = vdwg.mxu0
  %v470 = vmax.f32 %v392, 0.0
  %v471 = vmax.f32 %v397, 0.0
  %v472 = vmax.f32 %v402, 0.0
  %v473 = vmax.f32 %v407, 0.0
  %v474 = vmax.f32 %v412, 0.0
  %v475 = vmax.f32 %v417, 0.0
  %v476 = vmax.f32 %v422, 0.0
  %v477 = vmax.f32 %v427, 0.0
  %v478 = vmax.f32 %v432, 0.0
  %v479 = vmax.f32 %v437, 0.0
  %v480 = vmax.f32 %v442, 0.0
  %v481 = vmax.f32 %v447, 0.0
  %v482 = vmax.f32 %v452, 0.0
  %v483 = vmax.f32 %v457, 0.0
  %v484 = vmax.f32 %v462, 0.0
  %v485 = vmax.f32 %v467, 0.0
  %v487 = vlaneseq
  %v488 = vshrl.u32 %v487, 7
  %v489 = vsub.s32 0, %v488
  %v490 = vrot.slane %v38, %v489
  %vm492 = vcmask 130048
  %v494 = vsel %vm492, %v470, 0
  %v497 = vsel %vm492, %v471, 0
  %v500 = vsel %vm492, %v472, 0
  %v503 = vsel %vm492, %v473, 0
  %v506 = vsel %vm492, %v474, 0
  %v509 = vsel %vm492, %v475, 0
  %v512 = vsel %vm492, %v476, 0
  %v515 = vsel %vm492, %v477, 0
  %v518 = vsel %vm492, %v478, 0
  %v521 = vsel %vm492, %v479, 0
  %v524 = vsel %vm492, %v480, 0
  %v527 = vsel %vm492, %v481, 0
  %v530 = vsel %vm492, %v482, 0
  %v533 = vsel %vm492, %v483, 0
  %v536 = vsel %vm492, %v484, 0
  %v539 = vsel %vm492, %v485, 0
  %541 = vmatprep.subr.mxu0 0.0
  %542 = vmatpush1.msra.mxu0 0.0
  %543 = vmatprep.subr.mxu0 0.0
  %544 = vmatpush1.msra.mxu0 0.0
  %545 = vmatprep.subr.mxu0 0.0
  %546 = vmatpush1.msra.mxu0 0.0
  %547 = vmatprep.subr.mxu0 0.0
  %548 = vmatpush1.msra.mxu0 0.0
  %549 = vmatprep.subr.mxu0 0.0
  %550 = vmatpush1.msra.mxu0 0.0
  %551 = vmatprep.subr.mxu0 0.0
  %552 = vmatpush1.msra.mxu0 0.0
  %553 = vmatprep.subr.mxu0 0.0
  %554 = vmatpush1.msra.mxu0 0.0
  %555 = vmatprep.subr.mxu0 0.0
  %556 = vmatpush1.msra.mxu0 0.0
  %557 = vmatprep.subr.mxu0 0.0
  %558 = vmatpush1.msra.mxu0 0.0
  %559 = vmatprep.subr.mxu0 0.0
  %560 = vmatpush1.msra.mxu0 0.0
  %561 = vmatprep.subr.mxu0 0.0
  %562 = vmatpush1.msra.mxu0 0.0
  %563 = vmatprep.subr.mxu0 0.0
  %564 = vmatpush1.msra.mxu0 0.0
  %565 = vmatprep.subr.mxu0 0.0
  %566 = vmatpush1.msra.mxu0 0.0
  %567 = vmatprep.subr.mxu0 0.0
  %568 = vmatpush1.msra.mxu0 0.0
  %569 = vmatprep.subr.mxu0 0.0
  %570 = vmatpush1.msra.mxu0 %v35
  %571 = vmatprep.subr.mxu0 0.0
  %572 = vmatpush1.msra.mxu0 %v34
  %573 = vmatprep.subr.mxu0 0.0
  %574 = vmatpush2.msra.mxu0 0.0
  %575 = vmatprep.subr.mxu0 0.0
  %576 = vmatpush2.msra.mxu0 0.0
  %577 = vmatprep.subr.mxu0 0.0
  %578 = vmatpush2.msra.mxu0 0.0
  %579 = vmatprep.subr.mxu0 0.0
  %580 = vmatpush2.msra.mxu0 0.0
  %581 = vmatprep.subr.mxu0 0.0
  %582 = vmatpush2.msra.mxu0 0.0
  %583 = vmatprep.subr.mxu0 0.0
  %584 = vmatpush2.msra.mxu0 0.0
  %585 = vmatprep.subr.mxu0 0.0
  %586 = vmatpush2.msra.mxu0 0.0
  %587 = vmatprep.subr.mxu0 0.0
  %588 = vmatpush2.msra.mxu0 0.0
  %589 = vmatprep.subr.mxu0 0.0
  %590 = vmatpush2.msra.mxu0 0.0
  %591 = vmatprep.subr.mxu0 0.0
  %592 = vmatpush2.msra.mxu0 0.0
  %593 = vmatprep.subr.mxu0 0.0
  %594 = vmatpush2.msra.mxu0 0.0
  %595 = vmatprep.subr.mxu0 0.0
  %596 = vmatpush2.msra.mxu0 0.0
  %597 = vmatprep.subr.mxu0 0.0
  %598 = vmatpush2.msra.mxu0 0.0
  %599 = vmatprep.subr.mxu0 0.0
  %600 = vmatpush2.msra.mxu0 0.0
  %601 = vmatprep.subr.mxu0 0.0
  %602 = vmatpush2.msra.mxu0 0.0
  %603 = vmatprep.subr.mxu0 0.0
  %604 = vmatpush2.msra.mxu0 0.0
  %605 = vmatprep.mubr.f32.mxu0 0.0
  %606 = vmatmul.mubr.f32.gmra.mxu0 %v494
  %v607 = vpop.f32.mrf.mxu0
  %v608 = vadd.f32 %v490, %v607
  %v609 = vpop.f32.mrf.mxu0
  %610 = vmatprep.mubr.f32.mxu0 0.0
  %611 = vmatmul.mubr.f32.gmra.mxu0 %v497
  %v612 = vpop.f32.mrf.mxu0
  %v613 = vadd.f32 %v490, %v612
  %v614 = vpop.f32.mrf.mxu0
  %615 = vmatprep.mubr.f32.mxu0 0.0
  %616 = vmatmul.mubr.f32.gmra.mxu0 %v500
  %v617 = vpop.f32.mrf.mxu0
  %v618 = vadd.f32 %v490, %v617
  %v619 = vpop.f32.mrf.mxu0
  %620 = vmatprep.mubr.f32.mxu0 0.0
  %621 = vmatmul.mubr.f32.gmra.mxu0 %v503
  %v622 = vpop.f32.mrf.mxu0
  %v623 = vadd.f32 %v490, %v622
  %v624 = vpop.f32.mrf.mxu0
  %625 = vmatprep.mubr.f32.mxu0 0.0
  %626 = vmatmul.mubr.f32.gmra.mxu0 %v506
  %v627 = vpop.f32.mrf.mxu0
  %v628 = vadd.f32 %v490, %v627
  %v629 = vpop.f32.mrf.mxu0
  %630 = vmatprep.mubr.f32.mxu0 0.0
  %631 = vmatmul.mubr.f32.gmra.mxu0 %v509
  %v632 = vpop.f32.mrf.mxu0
  %v633 = vadd.f32 %v490, %v632
  %v634 = vpop.f32.mrf.mxu0
  %635 = vmatprep.mubr.f32.mxu0 0.0
  %636 = vmatmul.mubr.f32.gmra.mxu0 %v512
  %v637 = vpop.f32.mrf.mxu0
  %v638 = vadd.f32 %v490, %v637
  %v639 = vpop.f32.mrf.mxu0
  %640 = vmatprep.mubr.f32.mxu0 0.0
  %641 = vmatmul.mubr.f32.gmra.mxu0 %v515
  %v642 = vpop.f32.mrf.mxu0
  %v643 = vadd.f32 %v490, %v642
  %v644 = vpop.f32.mrf.mxu0
  %645 = vmatprep.mubr.f32.mxu0 0.0
  %646 = vmatmul.mubr.f32.gmra.mxu0 %v518
  %v647 = vpop.f32.mrf.mxu0
  %v648 = vadd.f32 %v490, %v647
  %v649 = vpop.f32.mrf.mxu0
  %650 = vmatprep.mubr.f32.mxu0 0.0
  %651 = vmatmul.mubr.f32.gmra.mxu0 %v521
  %v652 = vpop.f32.mrf.mxu0
  %v653 = vadd.f32 %v490, %v652
  %v654 = vpop.f32.mrf.mxu0
  %655 = vmatprep.mubr.f32.mxu0 0.0
  %656 = vmatmul.mubr.f32.gmra.mxu0 %v524
  %v657 = vpop.f32.mrf.mxu0
  %v658 = vadd.f32 %v490, %v657
  %v659 = vpop.f32.mrf.mxu0
  %660 = vmatprep.mubr.f32.mxu0 0.0
  %661 = vmatmul.mubr.f32.gmra.mxu0 %v527
  %v662 = vpop.f32.mrf.mxu0
  %v663 = vadd.f32 %v490, %v662
  %v664 = vpop.f32.mrf.mxu0
  %665 = vmatprep.mubr.f32.mxu0 0.0
  %666 = vmatmul.mubr.f32.gmra.mxu0 %v530
  %v667 = vpop.f32.mrf.mxu0
  %v668 = vadd.f32 %v490, %v667
  %v669 = vpop.f32.mrf.mxu0
  %670 = vmatprep.mubr.f32.mxu0 0.0
  %671 = vmatmul.mubr.f32.gmra.mxu0 %v533
  %v672 = vpop.f32.mrf.mxu0
  %v673 = vadd.f32 %v490, %v672
  %v674 = vpop.f32.mrf.mxu0
  %675 = vmatprep.mubr.f32.mxu0 0.0
  %676 = vmatmul.mubr.f32.gmra.mxu0 %v536
  %v677 = vpop.f32.mrf.mxu0
  %v678 = vadd.f32 %v490, %v677
  %v679 = vpop.f32.mrf.mxu0
  %680 = vmatprep.mubr.f32.mxu0 0.0
  %681 = vmatmul.mubr.f32.gmra.mxu0 %v539
  %v682 = vpop.f32.mrf.mxu0
  %v683 = vadd.f32 %v490, %v682
  %v684 = vpop.f32.mrf.mxu0
  %685 = vdwg.mxu0
  %686 = vst.msk [vmem:[%s7] sm:$0xff] %vm492, %v608
  %687 = vst.msk [vmem:[%s7 + $0x8] sm:$0xff] %vm492, %v613
  %688 = vst.msk [vmem:[%s7 + $0x10] sm:$0xff] %vm492, %v618
  %689 = vst.msk [vmem:[%s7 + $0x18] sm:$0xff] %vm492, %v623
  %690 = vst.msk [vmem:[%s7 + $0x20] sm:$0xff] %vm492, %v628
  %691 = vst.msk [vmem:[%s7 + $0x28] sm:$0xff] %vm492, %v633
  %692 = vst.msk [vmem:[%s7 + $0x30] sm:$0xff] %vm492, %v638
  %693 = vst.msk [vmem:[%s7 + $0x38] sm:$0xff] %vm492, %v643
  %694 = vst.msk [vmem:[%s7 + $0x40] sm:$0xff] %vm492, %v648
  %695 = vst.msk [vmem:[%s7 + $0x48] sm:$0xff] %vm492, %v653
  %696 = vst.msk [vmem:[%s7 + $0x50] sm:$0xff] %vm492, %v658
  %697 = vst.msk [vmem:[%s7 + $0x58] sm:$0xff] %vm492, %v663
  %698 = vst.msk [vmem:[%s7 + $0x60] sm:$0xff] %vm492, %v668
  %699 = vst.msk [vmem:[%s7 + $0x68] sm:$0xff] %vm492, %v673
  %700 = vst.msk [vmem:[%s7 + $0x70] sm:$0xff] %vm492, %v678
  %701 = vst.msk [vmem:[%s7 + $0x78] sm:$0xff] %vm492, %v683
  // Predicated region
  $region30: #{fourier_net_final_block.1} parent=0 // pred_check
    _
  $region31: #{fourier_net_final_block.1} parent=0 // pred_check_branch
    %703 = sbr.rel (0) target = $region33
  $region32: #{fourier_net_final_block.1} parent=0 // pred_region
    _
  $region33: #{fourier_net_final_block.1} parent=0 // pred_fallthru
    _
  // Predicated region
  $region34: #{fourier_net_final_block.1} parent=0 // pred_check
    _
  $region35: #{fourier_net_final_block.1} parent=0 // pred_check_branch
    %705 = sbr.rel (0) target = $region37
  $region36: #{fourier_net_final_block.1} parent=0 // pred_region
    _
  $region37: #{fourier_net_final_block.1} parent=0 // pred_fallthru
    _

</llo_original>
